<compile_context>
chip_gen: v5e
topology: v5e:2x2
jax: 0.10.0
libtpu: 0.0.40
codegen_flags: <defaults>
</compile_context>

<pallas_src>
import math

import jax
import jax.numpy as jnp
from jax.experimental import pallas as pl
from jax.experimental.pallas import tpu as pltpu


# ----------------------------------------------------------------------------
# Kernel
# ----------------------------------------------------------------------------
def token_embedding_kernel(x_ref, w_ref, o_ref):
    # x_ref: (TB, L, C)   full sequence, resident across the inner L-tile axis
    # w_ref: (3C, D)      fused taps, rows = [tap t-1 ; tap t ; tap t+1]
    # o_ref: (TB, TL, D)  one output tile (full d_model -> contiguous HBM rows)
    TB, L, C = x_ref.shape
    _, TL, D = o_ref.shape
    li = pl.program_id(1)                           # L-tile index (innermost)
    start = pl.multiple_of(li * TL, TL)

    xc = x_ref[:, pl.ds(start, TL), :]              # x[t]            (TB, TL, C)

    # Circular shifts via a 2-D sublane rotate over the merged (TB*TL, C) view
    # (XLU work, no concat-of-slices VMEM copies).
    flat = xc.reshape(TB * TL, C)
    xp = pltpu.roll(flat, shift=1, axis=0).reshape(TB, TL, C)            # ~x[t-1]
    xn = pltpu.roll(flat, shift=TB * TL - 1, axis=0).reshape(TB, TL, C)  # ~x[t+1]

    if not (TB == 1 and TL == L):
        # Patch the two halo rows per batch element from the resident full-L
        # block so the convolution stays circular across L-tile and
        # folded-batch boundaries.  Statically skipped when the roll already
        # is the exact circular shift (single batch element, full L).
        prev_row = x_ref[:, pl.ds((start + L - 1) % L, 1), :]   # x[(start-1) mod L]
        next_row = x_ref[:, pl.ds((start + TL) % L, 1), :]      # x[(start+TL) mod L]
        row = jax.lax.broadcasted_iota(jnp.int32, (TB, TL, C), 1)
        xp = jnp.where(row == 0, prev_row, xp)
        xn = jnp.where(row == TL - 1, next_row, xn)

    # One fused MXU matmul over all three taps: (TB*TL, 3C) @ (3C, D), f32 acc.
    x3 = jnp.concatenate([xp, xc, xn], axis=-1).reshape(TB * TL, 3 * C)
    acc = jnp.dot(x3, w_ref[...], preferred_element_type=jnp.float32)
    o_ref[...] = acc.reshape(TB, TL, D).astype(o_ref.dtype)


# ----------------------------------------------------------------------------
# Tile / VMEM budget selection
# ----------------------------------------------------------------------------
def _round_up(n, m):
    return ((n + m - 1) // m) * m


def _divisors(n):
    return [d for d in range(1, n + 1) if n % d == 0]


def _vmem_limit_bytes():
    """Per-generation VMEM budget: ~5/8 of physical capacity.

    ~80 MiB on 128-MiB v5e/v6e, ~40 MiB on 64-MiB v7x.  Falls back to a
    conservative (v7x-sized) capacity if the query is unavailable.
    """
    cap = None
    try:
        info = pltpu.get_tpu_info()
        cap = getattr(info, "vmem_capacity_bytes", None)
        cap = int(cap) if cap else None
    except Exception:
        cap = None
    if not cap:
        cap = 64 * 1024 * 1024
    limit = (5 * cap) // 8
    return max(32 * 1024 * 1024, min(limit, 96 * 1024 * 1024))


def _block_bytes(tb, tl, L, C, D, in_isz, out_isz):
    """Approximate VMEM footprint of one pipelined grid step (double buffered)."""
    r8 = lambda v: _round_up(v, 8)
    r128 = lambda v: _round_up(v, 128)
    x_blk = 2 * tb * r8(L) * r128(C) * in_isz       # resident x block (lane padded)
    w_blk = 2 * r8(3 * C) * r128(D) * in_isz        # fused weight
    o_blk = 2 * tb * r8(tl) * r128(D) * out_isz     # output tile
    tmp = tb * r8(tl) * (3 * r128(C) + r128(3 * C) + r128(D)) * 4  # taps + x3 + f32 acc
    return x_blk + w_blk + o_blk + tmp


def _select_tl(L, C, D, in_isz, out_isz, budget, target=2048):
    """Largest L tile (multiple of 8 dividing L, or L itself) fitting the budget."""
    cands = [d for d in _divisors(L) if d % 8 == 0 or d == L]
    cands.sort(reverse=True)
    for t in cands:
        if t <= target and _block_bytes(1, t, L, C, D, in_isz, out_isz) <= budget:
            return t
    for t in cands:
        if _block_bytes(1, t, L, C, D, in_isz, out_isz) <= budget:
            return t
    return cands[-1]


def _select_tb(B, L, tl, C, D, in_isz, out_isz, budget):
    """Fold batch elements into a block, but keep >= 2 total grid steps when
    possible so megacore parts (v7x: 2 TensorCores/chip) can split the grid."""
    cap = B if (L // tl) >= 2 else max(1, B // 2)
    best = 1
    for d in _divisors(B):
        if d <= cap and _block_bytes(d, tl, L, C, D, in_isz, out_isz) <= budget:
            best = d
    return best


# ----------------------------------------------------------------------------
# Wrapper
# ----------------------------------------------------------------------------
def token_embedding(x, weight, *, tl=None, tb=None, compute_dtype=None):
    """TimeMixer TokenEmbedding forward.

    x:      (B, L, c_in) ; weight: (d_model, c_in, 3)  (PyTorch Conv1d layout)
    returns (B, L, d_model)

    compute_dtype: optionally run x/weight DMA and MXU traffic in e.g.
      jnp.bfloat16 (accumulation stays f32, output keeps x.dtype).  Note: on
      v5e the VPU has no bf16 ALUs, so prefer f32 there unless the output is
      bf16 too.
    """
    B, L, C = x.shape
    D = weight.shape[0]
    out_dtype = x.dtype
    cdt = jnp.dtype(compute_dtype) if compute_dtype is not None else jnp.dtype(x.dtype)

    # (d_model, c_in, 3) -> (3, c_in, d_model) -> (3*c_in, d_model): fused rhs.
    w3 = jnp.transpose(weight, (2, 1, 0)).reshape(3 * C, D).astype(cdt)
    x = x.astype(cdt)

    in_isz = cdt.itemsize
    out_isz = jnp.dtype(out_dtype).itemsize

    vmem_limit = _vmem_limit_bytes()
    budget = (3 * vmem_limit) // 4     # headroom for pipeline bookkeeping

    # ---- tile selection: d_model is never tiled (td == D) ------------------
    if tl is None:
        tl = _select_tl(L, C, D, in_isz, out_isz, budget)
    assert L % tl == 0 and (tl % 8 == 0 or tl == L), (L, tl)
    if tb is None:
        tb = _select_tb(B, L, tl, C, D, in_isz, out_isz, budget)
    assert B % tb == 0, (B, tb)

    grid = (B // tb, L // tl)

    cost = pl.CostEstimate(
        flops=2 * B * L * (3 * C) * D,
        transcendentals=0,
        bytes_accessed=in_isz * (B * L * C + 3 * C * D) + out_isz * (B * L * D),
    )

    # TODO(synk): for d_model % 128 != 0 a fully lane-dense (B, L*d_model)
    # output slab (in-kernel relayout of the accumulator from (TB*TL, D) to
    # (TB, TL*D)) would avoid masked vst stores; left out pending a
    # guaranteed-supported Mosaic relayout for that reshape.  With td == D the
    # HBM writeback rows are already contiguous.
    return pl.pallas_call(
        token_embedding_kernel,
        out_shape=jax.ShapeDtypeStruct((B, L, D), out_dtype),
        grid_spec=pltpu.PrefetchScalarGridSpec(
            num_scalar_prefetch=0,
            grid=grid,
            in_specs=[
                # x: full (TB, L, C) block; constant index along the inner L
                # axis -> stays resident in VMEM, DMA'd once per batch tile.
                pl.BlockSpec((tb, L, C), lambda bi, li: (bi, 0, 0)),
                # fused weight (3C, D): constant across the whole grid.
                pl.BlockSpec((3 * C, D), lambda bi, li: (0, 0)),
            ],
            out_specs=pl.BlockSpec((tb, tl, D), lambda bi, li: (bi, li, 0)),
        ),
        compiler_params=pltpu.CompilerParams(
            dimension_semantics=("parallel", "parallel"),
            vmem_limit_bytes=vmem_limit,
        ),
        cost_estimate=cost,
    )(x, w3)


# ----------------------------------------------------------------------------
# Reference + demo
# ----------------------------------------------------------------------------
def _reference(x, weight):
    """Pure-JAX reference of the circular Conv1d, channels-last in/out."""
    x_ncl = jnp.transpose(x, (0, 2, 1))                            # (B, C, L)
    x_pad = jnp.pad(x_ncl, ((0, 0), (0, 0), (1, 1)), mode="wrap")
    y = jax.lax.conv_general_dilated(
        x_pad, weight, window_strides=(1,), padding="VALID",
        dimension_numbers=("NCH", "OIH", "NCH"))                   # (B, D, L)
    return jnp.transpose(y, (0, 2, 1))                             # (B, L, D)


if __name__ == "__main__":
    key = jax.random.PRNGKey(0)

    configs = [
        # (B, L, c_in, d_model, kwargs)
        (2, 16, 4, 128, {}),                  # auto: batch-split grid, patch-free roll, lane-dense D
        (2, 64, 4, 32, dict(tl=16)),          # 4 L tiles -> circular halo fix-up across tile edges
        (4, 32, 7, 256, {}),                  # auto: folded batch (tb=2), halo fix-up across batch rows
        (2, 32, 4, 256, dict(tl=8, tb=2)),    # forced small tiles: multi-step grid, both halo paths
    ]
    for i, (B, L, c_in, d_model, kwargs) in enumerate(configs):
        kx, kwgt, key = jax.random.split(key, 3)
        x = jax.random.normal(kx, (B, L, c_in), dtype=jnp.float32)
        # Deterministic Kaiming-normal init (fan_in = c_in * kernel_size, gain≈sqrt(2)).
        std = math.sqrt(2.0) / math.sqrt(c_in * 3)
        weight = std * jax.random.normal(kwgt, (d_model, c_in, 3), dtype=jnp.float32)

        out = jax.block_until_ready(token_embedding(x, weight, **kwargs))
        ref = _reference(x, weight)
        assert out.shape == (B, L, d_model)
        assert jnp.allclose(out, ref, atol=1e-5, rtol=1e-5), f"mismatch in config {i}"

    print("KERNEL_OK")
</pallas_src>

<mosaic_0001>
module attributes {stable_mosaic.version = 11 : i64} {
  func.func @token_embedding_kernel(%arg0: i32, %arg1: i32, %arg2: memref<1x16x4xf32, #tpu.memory_space<vmem>>, %arg3: memref<12x128xf32, #tpu.memory_space<vmem>>, %arg4: memref<1x16x128xf32, #tpu.memory_space<vmem>>) attributes {dimension_semantics = [#tpu.dimension_semantics<parallel>, #tpu.dimension_semantics<parallel>], iteration_bounds = array<i64: 2, 1>, scalar_prefetch = 0 : i64, scratch_operands = 0 : i64, tpu.core_type = #tpu.core_type<tc>, window_params = [{transform_indices = @transform_0, window_bounds = array<i64: 1, 16, 4>}, {pipeline_mode = #tpu.pipeline_mode<synchronous>, transform_indices = @transform_1, window_bounds = array<i64: 12, 128>}, {transform_indices = @transform_2, window_bounds = array<i64: 1, 16, 128>}]} {
    %c16_i32 = arith.constant 16 : i32
    %0 = arith.muli %arg1, %c16_i32 : i32
    %1 = tpu.assume_multiple %0, 16 : i32
    %c0 = arith.constant 0 : index
    %2 = arith.index_cast %1 : i32 to index
    %c0_0 = arith.constant 0 : index
    %3 = vector.load %arg2[%c0, %2, %c0_0] : memref<1x16x4xf32, #tpu.memory_space<vmem>>, vector<1x16x4xf32>
    %4 = vector.shape_cast %3 : vector<1x16x4xf32> to vector<16x4xf32>
    %c1_i32 = arith.constant 1 : i32
    %5 = tpu.dynamic_rotate %4 by %c1_i32 dim 0 : vector<16x4xf32>, i32 -> vector<16x4xf32>
    %6 = vector.shape_cast %5 : vector<16x4xf32> to vector<1x16x4xf32>
    %c15_i32 = arith.constant 15 : i32
    %7 = tpu.dynamic_rotate %4 by %c15_i32 dim 0 : vector<16x4xf32>, i32 -> vector<16x4xf32>
    %8 = vector.shape_cast %7 : vector<16x4xf32> to vector<1x16x4xf32>
    %9 = tpu.concatenate %6, %3, %8 in 2 : vector<1x16x4xf32>, vector<1x16x4xf32>, vector<1x16x4xf32> -> vector<1x16x12xf32>
    %10 = vector.shape_cast %9 : vector<1x16x12xf32> to vector<16x12xf32>
    %c0_1 = arith.constant 0 : index
    %c0_2 = arith.constant 0 : index
    %11 = vector.load %arg3[%c0_1, %c0_2] : memref<12x128xf32, #tpu.memory_space<vmem>>, vector<12x128xf32>
    %cst = arith.constant dense<0.000000e+00> : vector<16x128xf32>
    %12 = tpu.matmul %10, %11, %cst {dimension_numbers = #tpu.dot_dimension_numbers<[1], [0], [0], [1], [0, 0, 1, 1], [], []>} : vector<16x12xf32>, vector<12x128xf32>, vector<16x128xf32> -> vector<16x128xf32>
    %13 = vector.shape_cast %12 : vector<16x128xf32> to vector<1x16x128xf32>
    %c0_3 = arith.constant 0 : index
    %c0_4 = arith.constant 0 : index
    %c0_5 = arith.constant 0 : index
    %14 = vector.load %arg4[%c0_3, %c0_4, %c0_5] : memref<1x16x128xf32, #tpu.memory_space<vmem>>, vector<1x16x128xf32>
    tpu.vector_store %arg4[%c0_3, %c0_4, %c0_5], %13 {strides = array<i32>} : memref<1x16x128xf32, #tpu.memory_space<vmem>>, vector<1x16x128xf32>,
    return
  }
  func.func @transform_0(%arg0: i32, %arg1: i32) -> (i32, i32, i32) {
    %c0_i32 = arith.constant 0 : i32
    %c0_i32_0 = arith.constant 0 : i32
    %c0_i32_1 = arith.constant 0 : i32
    return %arg0, %c0_i32, %c0_i32_0 : i32, i32, i32
  }
  func.func @transform_1(%arg0: i32, %arg1: i32) -> (i32, i32) {
    %c0_i32 = arith.constant 0 : i32
    %c0_i32_0 = arith.constant 0 : i32
    %c0_i32_1 = arith.constant 0 : i32
    return %c0_i32, %c0_i32_0 : i32, i32
  }
  func.func @transform_2(%arg0: i32, %arg1: i32) -> (i32, i32, i32) {
    %c0_i32 = arith.constant 0 : i32
    %c0_i32_0 = arith.constant 0 : i32
    return %arg0, %arg1, %c0_i32 : i32, i32, i32
  }
}

</mosaic_0001>

<llo_original>
// kernel: tpu_custom_call.1
$region0: #{tpu_custom_call.1}
  #allocation0 [shape = 'u32[]', space=smem, size = 0x4, offset = 0x4, fixed_abs, tag = 'smem constant byte address 0x4 - core index']
  #allocation1 [shape = 'u32[72,128]{1,0:T(1,128)}', space=vmem, size = 0x9000, scoped, tag = 'internal scratch']
  %s0 = inlined_call_operand.vmem [shape: f32[2,16,4], index: 0, kind: input, shape index: {}]
  %s1 = inlined_call_operand.vmem [shape: f32[12,128], index: 1, kind: input, shape index: {}]
  %s2 = inlined_call_operand.hbm [shape: f32[2,16,128], index: 2, kind: output, shape index: {}]
  %s3 = sld [smem:[#allocation0]]
  $region41: #{tpu_custom_call.1} parent=0
    _
  %s5 = ssub.s32 1, %s3
  %s6 = scalar_select 0, %s5, %s3
  $region1: #{tpu_custom_call.1} parent=0
    #allocation2 [shape = 'u8[16384]{0}', space=vmem, size = 0x4000, scoped, tag = 'output window, operand 0']
    #allocation3 [shape = 's32[2]{0}', space=sflag, size = 0x8, scoped, tag = 'scoped memory for tpu_custom_call.1']
    %7 = vsyncpa [#allocation3], 0
    %s8 = scalar_lea.sflag [#allocation3], 1
    %9 = vsyncpa %s8, 0
    loop: start=0, step=1, limit=4
    $region2: #{tpu_custom_call.1} parent=1 // loop_pre_header
      _
    $region3: #{tpu_custom_call.1} parent=1 // loop_header
      %s11 = sphi 0, %s15
      %p12 = scmp.ge.s32.totalorder %s11, 4
      %s18 = sphi 0, %s30
      %s19 = sphi 0, %s26
      %s20 = sphi 0, %s18
      %s21 = sphi 0, %s19
      %s22 = sphi 0, %s20
      %s23 = sphi 0, %s21
      %s33 = sphi 0, %s35
      %s36 = sphi 0, %s33
      %s37 = sphi 0, %s36
      %s53 = sphi 0, %s37
      %s57 = sphi 0, %s57
      %s59 = sphi 0, %s57
      %s60 = sphi 0, %s59
      %s74 = sphi 0, %s60
      %s82 = sphi 0, %s84
      %s85 = sphi 0, %s82
      %s86 = sphi 0, %s85
      %s102 = sphi 0, %s86
    $region4: #{tpu_custom_call.1} parent=1 // loop_header_branch
      %14 = sbr.rel (%p12) target = $region8
    $region5: #{tpu_custom_call.1} parent=1 // loop_body
      %s16 = ssub.s32 %s11, 1
      %s17 = ssub.s32 %s11, 2
      %s24 = sadd.s32 1, %s19
      %p25 = scmp.ge.s32.totalorder %s24, 1
      %s26 = scalar_select %p25, 0, %s24
      %s27 = sadd.s32 1, %s18
      %s28 = scalar_select %p25, %s27, %s18
      %p29 = scmp.ge.s32.totalorder %s28, 2
      %s30 = scalar_select %p29, 0, %s28
      %s31 = ssub.s32 %s18, %s30
      %p32 = scmp.eq.s32.totalorder %s31, 0
      %s34 = sadd.s32 %s33, 1
      %s35 = scalar_select %p32, %s33, %s34
      %p38 = pneg %p32
      %p39 = scmp.eq.s32.totalorder %s11, 1
      %p40 = por %p38, %p39
      %p41 = scmp.ne.s32.totalorder %s33, %s36
      %p42 = scmp.eq.s32.totalorder %s11, 0
      %p43 = por %p41, %p42
      %p44 = scmp.ne.s32.totalorder %s33, %s36
      %p45 = scmp.eq.s32.totalorder %s16, 1
      %p46 = por %p44, %p45
      %p47 = scmp.ne.s32.totalorder %s36, %s37
      %p48 = scmp.eq.s32.totalorder %s16, 0
      %p49 = por %p47, %p48
      %p50 = scmp.ne.s32.totalorder %s36, %s37
      %p51 = scmp.eq.s32.totalorder %s17, 1
      %p52 = por %p50, %p51
      %p54 = scmp.ne.s32.totalorder %s37, %s53
      %p55 = scmp.eq.s32.totalorder %s17, 0
      %p56 = por %p54, %p55
      %s58 = sadd.s32 %s57, 1
      %p61 = scmp.eq.s32.totalorder %s11, 1
      %p62 = scmp.ne.s32.totalorder %s57, %s59
      %p63 = scmp.eq.s32.totalorder %s11, 0
      %p64 = por %p62, %p63
      %p65 = scmp.ne.s32.totalorder %s57, %s59
      %p66 = scmp.eq.s32.totalorder %s16, 1
      %p67 = por %p65, %p66
      %p68 = scmp.ne.s32.totalorder %s59, %s60
      %p69 = scmp.eq.s32.totalorder %s16, 0
      %p70 = por %p68, %p69
      %p71 = scmp.ne.s32.totalorder %s59, %s60
      %p72 = scmp.eq.s32.totalorder %s17, 1
      %p73 = por %p71, %p72
      %p75 = scmp.ne.s32.totalorder %s60, %s74
      %p76 = scmp.eq.s32.totalorder %s17, 0
      %p77 = por %p75, %p76
      %s78 = ssub.s32 %s18, %s30
      %s79 = ssub.s32 %s19, %s26
      %s80 = sor.u32 %s78, %s79
      %p81 = scmp.eq.s32.totalorder %s80, 0
      %s83 = sadd.s32 %s82, 1
      %s84 = scalar_select %p81, %s82, %s83
      %p87 = pneg %p81
      %p88 = scmp.eq.s32.totalorder %s11, 1
      %p89 = por %p87, %p88
      %p90 = scmp.ne.s32.totalorder %s82, %s85
      %p91 = scmp.eq.s32.totalorder %s11, 0
      %p92 = por %p90, %p91
      %p93 = scmp.ne.s32.totalorder %s82, %s85
      %p94 = scmp.eq.s32.totalorder %s16, 1
      %p95 = por %p93, %p94
      %p96 = scmp.ne.s32.totalorder %s85, %s86
      %p97 = scmp.eq.s32.totalorder %s16, 0
      %p98 = por %p96, %p97
      %p99 = scmp.ne.s32.totalorder %s85, %s86
      %p100 = scmp.eq.s32.totalorder %s17, 1
      %p101 = por %p99, %p100
      %p103 = scmp.ne.s32.totalorder %s86, %s102
      %p104 = scmp.eq.s32.totalorder %s17, 0
      %p105 = por %p103, %p104
      %p106 = scmp.le.s32.totalorder 1, %s11
      %p107 = scmp.lt.s32.totalorder %s11, 3
      %p108 = pnand %p106, %p107
      %p109 = pneg %p108
      // Predicated region
      $region9: #{tpu_custom_call.1} parent=5 // pred_check
        _
      $region10: #{tpu_custom_call.1} parent=5 // pred_check_branch
        %111 = sbr.rel (%p108) target = $region12
      $region11: #{tpu_custom_call.1} parent=5 // pred_region
        %s112 = ssub.s32 %s11, 1
        // Predicated region
        $region13: #{tpu_custom_call.1} parent=11 // pred_check
          %p113 = pneg %p70
        $region14: #{tpu_custom_call.1} parent=11 // pred_check_branch
          %115 = sbr.rel (%p113) target = $region16
        $region15: #{tpu_custom_call.1} parent=11 // pred_region
          _
        $region16: #{tpu_custom_call.1} parent=11 // pred_fallthru
          _
      $region12: #{tpu_custom_call.1} parent=5 // pred_fallthru
        _
      %p116 = scmp.lt.s32.totalorder %s11, 2
      // Predicated region
      $region17: #{tpu_custom_call.1} parent=5 // pred_check
        %p117 = pneg %p116
      $region18: #{tpu_custom_call.1} parent=5 // pred_check_branch
        %119 = sbr.rel (%p117) target = $region20
      $region19: #{tpu_custom_call.1} parent=5 // pred_region
        // Predicated region
        $region21: #{tpu_custom_call.1} parent=19 // pred_check
          %p120 = pneg %p43
        $region22: #{tpu_custom_call.1} parent=19 // pred_check_branch
          %122 = sbr.rel (%p120) target = $region24
        $region23: #{tpu_custom_call.1} parent=19 // pred_region
          %p123 = scmp.lt.s32.totalorder %s18, 1
          %s124 = scalar_select %p123, %s18, 1
          %s125 = smul.addr %s124, 2
          %s126 = smul.addr %s125, 8
          %s127 = scalar_lea.vmem %s0, %s126
        $region24: #{tpu_custom_call.1} parent=19 // pred_fallthru
          _
      $region20: #{tpu_custom_call.1} parent=5 // pred_fallthru
        _
      %p128 = scmp.le.s32.totalorder 1, %s11
      %p129 = scmp.lt.s32.totalorder %s11, 3
      %p130 = pnand %p128, %p129
      %p131 = pneg %p130
      // Predicated region
      $region25: #{tpu_custom_call.1} parent=5 // pred_check
        _
      $region26: #{tpu_custom_call.1} parent=5 // pred_check_branch
        %133 = sbr.rel (%p130) target = $region28
      $region27: #{tpu_custom_call.1} parent=5 // pred_region
        %s134 = ssub.s32 %s11, 1
        %p135 = scmp.lt.s32.totalorder %s20, 1
        %s136 = scalar_select %p135, %s20, 1
        %s137 = smul.addr %s136, 2
        %s138 = smul.addr %s137, 8
        %s139 = scalar_lea.vmem %s0, %s138
        %p140 = pneg %p49
        %p141 = pneg %p46
        %p142 = pneg %p70
        %p143 = pneg %p67
        %p144 = pneg %p98
        %p145 = pneg %p95
        %s146 = sand.u32 %s85, 1
        %s147 = scalar_lea.sflag [#allocation3], %s146
        %s148 = sand.u32 %s85, 1
        %s149 = smul.addr %s148, 16
        %s150 = scalar_lea.vmem [#allocation2], %s149
        %p151 = scmp.lt.s32.totalorder %s20, 1
        %s152 = scalar_select %p151, %s20, 1
        %s153 = smul.addr %s152, 2
        %s154 = smul.addr %s153, 8
        %s155 = scalar_lea.vmem %s0, %s154
        %s156 = smul.u32 2, %s21
        %s157 = smul.u32 %s21, 16
        %s158 = scalar_lea.vmem %s155, %s157
        %v159 = vld [vmem:[%s158] sm:$0xff]
        %v160 = vld [vmem:[%s158 + $0x8] sm:$0xff]
        %v161 = vrot.slane %v159, 7
        %v162 = vrot.slane %v160, 7
        %v163 = vlaneseq
        %v164 = vshrl.u32 %v163, 7
        %vm165 = vcmp.lt.s32.totalorder %v164, 1
        %v166 = vsel %vm165, %v161, %v162
        %v167 = vsel %vm165, %v162, %v161
        %v168 = vrot.slane %v159, 1
        %v169 = vrot.slane %v160, 1
        %vm170 = vcmp.lt.s32.totalorder %v164, 7
        %v171 = vsel %vm170, %v168, %v169
        %v172 = vsel %vm170, %v169, %v168
        %175 = vrot.lane.b32.xlu0 %v159, 4
        %v176 = vpop.permute.xlu0 %175
        %177 = vrot.lane.b32.xlu0 %v160, 4
        %v178 = vpop.permute.xlu0 %177
        %183 = vrot.lane.b32.xlu0 %v171, 8
        %v184 = vpop.permute.xlu0 %183
        %185 = vrot.lane.b32.xlu0 %v172, 8
        %v186 = vpop.permute.xlu0 %185
        %vm189 = vcmask 31744
        %v190 = vsel %vm189, %v167, %v176
        %v191 = vsel %vm189, %v166, %v178
        %vm192 = vcmask 64512
        %v193 = vsel %vm192, %v190, %v184
        %v194 = vsel %vm192, %v191, %v186
        %v195 = vld [vmem:[%s1] sm:$0xff]
        %v196 = vld [vmem:[%s1 + $0x8] sm:$0xf]
        %vm197 = vcmask 97280
        %v199 = vsel %vm197, %v193, 0
        %v202 = vsel %vm197, %v194, 0
        %vm204 = vcmask 1043456
        %v206 = vsel %vm204, %v196, 0
        %208 = vmatpush.msra.mxu0 0.0
        %209 = vmatpush.msra.mxu0 0.0
        %210 = vmatpush.msra.mxu0 0.0
        %211 = vmatpush.msra.mxu0 0.0
        %212 = vmatpush.msra.mxu0 0.0
        %213 = vmatpush.msra.mxu0 0.0
        %214 = vmatpush.msra.mxu0 0.0
        %215 = vmatpush.msra.mxu0 0.0
        %216 = vmatpush.msra.mxu0 0.0
        %217 = vmatpush.msra.mxu0 0.0
        %218 = vmatpush.msra.mxu0 0.0
        %219 = vmatpush.msra.mxu0 0.0
        %220 = vmatpush.msra.mxu0 0.0
        %221 = vmatpush.msra.mxu0 0.0
        %222 = vmatpush.msra.mxu0 %v206
        %223 = vmatpush.msra.mxu0 %v195
        %224 = vmatmul.f32.gmra.mxu0 %v199
        %v225 = vpop.f32.mrf.mxu0
        %v226 = vadd.f32 0.0, %v225
        %227 = vmatmul.f32.gmra.mxu0 %v202
        %v228 = vpop.f32.mrf.mxu0
        %v229 = vadd.f32 0.0, %v228
        %230 = vdwg.mxu0
        %231 = vst [vmem:[%s150] sm:$0xff] %v226
        %232 = vst [vmem:[%s150 + $0x8] sm:$0xff] %v229
        %s233 = sand.u32 %s85, 1
        %s234 = scalar_lea.sflag [#allocation3], %s233
        %s235 = sand.u32 %s85, 1
        %s236 = smul.addr %s235, 16
        %s237 = scalar_lea.vmem [#allocation2], %s236
        // Predicated region
        $region29: #{tpu_custom_call.1} parent=27 // pred_check
          %p238 = pneg %p95
        $region30: #{tpu_custom_call.1} parent=27 // pred_check_branch
          %240 = sbr.rel (%p238) target = $region32
        $region31: #{tpu_custom_call.1} parent=27 // pred_region
          %s241 = smul.u32 2, %s21
          %243 = vsyncadd %s234, 0
          %s244 = smul.addr %s20, 2
          %s245 = sadd.s32 %s241, %s244
          %s246 = smul.addr %s245, 8
          %s247 = scalar_lea.hbm %s2, %s246
          %s248 = sshll.u32 %s237, 4
          %s249 = int_to_ptr.vmem [resolvable:$true] %s248
          %s250 = sshll.u32 %s247, 4
          %s251 = int_to_ptr.hbm [resolvable:$true] %s250
          %256 = dma.vmem_to_hbm [thread:$0]  %s249, 256, %s251, %s234, 128, 128, 8
        $region32: #{tpu_custom_call.1} parent=27 // pred_fallthru
          _
      $region28: #{tpu_custom_call.1} parent=5 // pred_fallthru
        _
      %p257 = scmp.le.s32.totalorder 2, %s11
      // Predicated region
      $region33: #{tpu_custom_call.1} parent=5 // pred_check
        %p258 = pneg %p257
      $region34: #{tpu_custom_call.1} parent=5 // pred_check_branch
        %260 = sbr.rel (%p258) target = $region36
      $region35: #{tpu_custom_call.1} parent=5 // pred_region
        %s261 = ssub.s32 %s11, 2
        // Predicated region
        $region37: #{tpu_custom_call.1} parent=35 // pred_check
          %p262 = pneg %p101
        $region38: #{tpu_custom_call.1} parent=35 // pred_check_branch
          %264 = sbr.rel (%p262) target = $region40
        $region39: #{tpu_custom_call.1} parent=35 // pred_region
          %s265 = sand.u32 %s86, 1
          %s266 = scalar_lea.sflag [#allocation3], %s265
          %s267 = sand.u32 %s86, 1
          %s268 = smul.addr %s267, 16
          %s269 = scalar_lea.vmem [#allocation2], %s268
          %271 = dma.done %s266, 256
        $region40: #{tpu_custom_call.1} parent=35 // pred_fallthru
          _
      $region36: #{tpu_custom_call.1} parent=5 // pred_fallthru
        _
    $region6: #{tpu_custom_call.1} parent=1 // loop_footer
      %s15 = sadd.s32 1, %s11
    $region7: #{tpu_custom_call.1} parent=1 // loop_footer_branch
      %10 = sbr.rel target = $region3
    $region8: #{tpu_custom_call.1} parent=1 // loop_exit
      _
    %272 = vsyncpa [#allocation3], 1
    %s273 = scalar_lea.sflag [#allocation3], 1
    %274 = vsyncpa %s273, 1

</llo_original>
